<compile_context>
chip_gen: v7x
topology: tpu7x:2x2x1
jax: 0.10.0
libtpu: 0.0.40
codegen_flags: <defaults>
</compile_context>

<pallas_src>
import jax
import jax.numpy as jnp
from jax.experimental import pallas as pl
from jax.experimental.pallas import tpu as pltpu

SELU_ALPHA = 1.6732632423543772
SELU_SCALE = 1.0507009873554805


def _round_up(n, m):
    return ((n + m - 1) // m) * m


def _selu(v):
    # SELU in f32; clamp the exp argument so the unselected branch stays finite.
    neg = SELU_ALPHA * (jnp.exp(jnp.minimum(v, 0.0)) - 1.0)
    return SELU_SCALE * jnp.where(v > 0, v, neg)


def snn_kernel(x_ref, w1_ref, b1_ref, w2_ref, b2_ref, w3_ref, b3_ref,
               wo_ref, bo_ref, out_ref):
    # Weights are bf16 (MXU operands); x is read as f32 and cast in-kernel.
    # Accumulation, bias add and SELU stay f32 (v5e-safe).
    x = x_ref[...].astype(jnp.bfloat16)
    h = jnp.dot(x, w1_ref[...], preferred_element_type=jnp.float32)
    h = _selu(h + b1_ref[...])

    h = jnp.dot(h.astype(jnp.bfloat16), w2_ref[...],
                preferred_element_type=jnp.float32)
    h = _selu(h + b2_ref[...])

    h = jnp.dot(h.astype(jnp.bfloat16), w3_ref[...],
                preferred_element_type=jnp.float32)
    h = _selu(h + b3_ref[...])

    y = jnp.dot(h.astype(jnp.bfloat16), wo_ref[...],
                preferred_element_type=jnp.float32) + bo_ref[...]
    out_ref[...] = y.astype(out_ref.dtype)


def prepare_params(params):
    """One-time prep: zero-pad lane (N) dims to multiples of 128 and cast
    weights to bf16. Zero-padding keeps the math exact: padded weight rows and
    columns contribute 0, padded bias entries are 0, and SELU(0) = 0, so
    padded hidden features stay exactly 0 through every layer."""
    w1, b1, w2, b2, w3, b3, wo, bo = params
    D_in, H = w1.shape
    C = wo.shape[1]
    H_pad = _round_up(H, 128)
    C_pad = _round_up(C, 128)

    def pad2(a, rows, cols, dtype):
        a = jnp.pad(a, ((0, rows - a.shape[0]), (0, cols - a.shape[1])))
        return a.astype(dtype)

    padded = (
        pad2(w1, D_in, H_pad, jnp.bfloat16),   # K (input features) NOT padded
        pad2(b1, 1, H_pad, jnp.float32),
        pad2(w2, H_pad, H_pad, jnp.bfloat16),
        pad2(b2, 1, H_pad, jnp.float32),
        pad2(w3, H_pad, H_pad, jnp.bfloat16),
        pad2(b3, 1, H_pad, jnp.float32),
        pad2(wo, H_pad, C_pad, jnp.bfloat16),
        pad2(bo, 1, C_pad, jnp.float32),
    )
    return {"padded": padded, "dims": (D_in, H_pad, C_pad, C)}


def snn_forward(x, prepared, *, bm=512):
    """Fused MLP forward. x: [B, input_size] f32. Returns [B, num_classes] f32."""
    w1p, b1p, w2p, b2p, w3p, b3p, wop, bop = prepared["padded"]
    D_in, H_pad, C_pad, C = prepared["dims"]
    B = x.shape[0]
    assert x.shape[1] == D_in, (x.shape, D_in)

    # Batch tile: 16-aligned (bf16 sublane packing of the in-kernel cast),
    # no larger than the padded batch, and capped at ~half the batch so the
    # "parallel" grid axis keeps >= 2 tiles (v7x megacore) whenever possible.
    B16 = _round_up(B, 16)
    bm_eff = min(_round_up(bm, 16), B16)
    if B16 >= 32:
        bm_eff = min(bm_eff, _round_up(-(-B16 // 2), 16))
    B_pad = _round_up(B, bm_eff)

    xp = x if B_pad == B else jnp.pad(x, ((0, B_pad - B), (0, 0)))

    grid = (B_pad // bm_eff,)
    full = lambda shape: pl.BlockSpec(shape, lambda i: (0, 0))  # grid-invariant

    out = pl.pallas_call(
        snn_kernel,
        out_shape=jax.ShapeDtypeStruct((B_pad, C_pad), jnp.float32),
        grid_spec=pltpu.PrefetchScalarGridSpec(
            num_scalar_prefetch=0,
            grid=grid,
            in_specs=[
                pl.BlockSpec((bm_eff, D_in), lambda i: (i, 0)),  # x tile, K unpadded
                full((D_in, H_pad)), full((1, H_pad)),           # fc1
                full((H_pad, H_pad)), full((1, H_pad)),          # fc2
                full((H_pad, H_pad)), full((1, H_pad)),          # fc3
                full((H_pad, C_pad)), full((1, C_pad)),          # output
            ],
            out_specs=pl.BlockSpec((bm_eff, C_pad), lambda i: (i, 0)),
        ),
        compiler_params=pltpu.CompilerParams(
            dimension_semantics=("parallel",),
            vmem_limit_bytes=32 * 1024 * 1024),
    )(xp, w1p, b1p, w2p, b2p, w3p, b3p, wop, bop)

    return out[:B, :C]


def init_params(key, input_size, hidden_size, num_classes):
    """PyTorch-nn.Linear-style init (uniform +/- 1/sqrt(fan_in)).

    Weights returned as [in, out] (already transposed for x @ W)."""
    def linear(k, fan_in, fan_out):
        kw, kb = jax.random.split(k)
        bound = 1.0 / jnp.sqrt(fan_in)
        w = jax.random.uniform(kw, (fan_in, fan_out), jnp.float32, -bound, bound)
        b = jax.random.uniform(kb, (1, fan_out), jnp.float32, -bound, bound)
        return w, b

    k1, k2, k3, k4 = jax.random.split(key, 4)
    w1, b1 = linear(k1, input_size, hidden_size)
    w2, b2 = linear(k2, hidden_size, hidden_size)
    w3, b3 = linear(k3, hidden_size, hidden_size)
    wo, bo = linear(k4, hidden_size, num_classes)
    return (w1, b1, w2, b2, w3, b3, wo, bo)


def snn_reference(x, params):
    """Plain-JAX f32 reference of the same forward pass."""
    w1, b1, w2, b2, w3, b3, wo, bo = params
    h = jax.nn.selu(x @ w1 + b1)
    h = jax.nn.selu(h @ w2 + b2)
    h = jax.nn.selu(h @ w3 + b3)
    return h @ wo + bo


if __name__ == "__main__":
    input_size, hidden_size, num_classes = 32, 32, 8
    batch = 200  # ragged on purpose: exercises the padding + 2-tile grid path

    key = jax.random.PRNGKey(0)
    kx, kp = jax.random.split(key)
    x = jax.random.normal(kx, (batch, input_size), jnp.float32)
    params = init_params(kp, input_size, hidden_size, num_classes)

    prepared = prepare_params(params)          # one-time pad + bf16 cast
    fwd = jax.jit(lambda xx: snn_forward(xx, prepared))

    out = jax.block_until_ready(fwd(x))

    ref = snn_reference(x, params)
    assert out.shape == (batch, num_classes)
    max_err = float(jnp.max(jnp.abs(out - ref)))
    # bf16 MXU operands with f32 accumulation: allow bf16-level tolerance.
    assert jnp.allclose(out, ref, atol=5e-2, rtol=5e-2), \
        f"mismatch vs reference (max err {max_err})"

    print("KERNEL_OK")
</pallas_src>

<mosaic_0001>
module attributes {stable_mosaic.version = 11 : i64} {
  func.func @snn_kernel(%arg0: i32, %arg1: memref<112x32xf32, #tpu.memory_space<vmem>>, %arg2: memref<32x128xbf16, #tpu.memory_space<vmem>>, %arg3: memref<1x128xf32, #tpu.memory_space<vmem>>, %arg4: memref<128x128xbf16, #tpu.memory_space<vmem>>, %arg5: memref<1x128xf32, #tpu.memory_space<vmem>>, %arg6: memref<128x128xbf16, #tpu.memory_space<vmem>>, %arg7: memref<1x128xf32, #tpu.memory_space<vmem>>, %arg8: memref<128x128xbf16, #tpu.memory_space<vmem>>, %arg9: memref<1x128xf32, #tpu.memory_space<vmem>>, %arg10: memref<112x128xf32, #tpu.memory_space<vmem>>) attributes {dimension_semantics = [#tpu.dimension_semantics<parallel>], iteration_bounds = array<i64: 2>, scalar_prefetch = 0 : i64, scratch_operands = 0 : i64, tpu.core_type = #tpu.core_type<tc>, window_params = [{transform_indices = @transform_0, window_bounds = array<i64: 112, 32>}, {pipeline_mode = #tpu.pipeline_mode<synchronous>, transform_indices = @transform_1, window_bounds = array<i64: 32, 128>}, {pipeline_mode = #tpu.pipeline_mode<synchronous>, transform_indices = @transform_2, window_bounds = array<i64: 1, 128>}, {pipeline_mode = #tpu.pipeline_mode<synchronous>, transform_indices = @transform_3, window_bounds = array<i64: 128, 128>}, {pipeline_mode = #tpu.pipeline_mode<synchronous>, transform_indices = @transform_4, window_bounds = array<i64: 1, 128>}, {pipeline_mode = #tpu.pipeline_mode<synchronous>, transform_indices = @transform_5, window_bounds = array<i64: 128, 128>}, {pipeline_mode = #tpu.pipeline_mode<synchronous>, transform_indices = @transform_6, window_bounds = array<i64: 1, 128>}, {pipeline_mode = #tpu.pipeline_mode<synchronous>, transform_indices = @transform_7, window_bounds = array<i64: 128, 128>}, {pipeline_mode = #tpu.pipeline_mode<synchronous>, transform_indices = @transform_8, window_bounds = array<i64: 1, 128>}, {transform_indices = @transform_9, window_bounds = array<i64: 112, 128>}]} {
    %c0 = arith.constant 0 : index
    %c0_0 = arith.constant 0 : index
    %0 = vector.load %arg1[%c0, %c0_0] : memref<112x32xf32, #tpu.memory_space<vmem>>, vector<112x32xf32>
    %1 = arith.truncf %0 : vector<112x32xf32> to vector<112x32xbf16>
    %c0_1 = arith.constant 0 : index
    %c0_2 = arith.constant 0 : index
    %2 = vector.load %arg2[%c0_1, %c0_2] : memref<32x128xbf16, #tpu.memory_space<vmem>>, vector<32x128xbf16>
    %cst = arith.constant dense<0.000000e+00> : vector<112x128xf32>
    %3 = tpu.matmul %1, %2, %cst {dimension_numbers = #tpu.dot_dimension_numbers<[1], [0], [0], [1], [0, 0, 1, 1], [], []>} : vector<112x32xbf16>, vector<32x128xbf16>, vector<112x128xf32> -> vector<112x128xf32>
    %c0_3 = arith.constant 0 : index
    %c0_4 = arith.constant 0 : index
    %4 = vector.load %arg3[%c0_3, %c0_4] : memref<1x128xf32, #tpu.memory_space<vmem>>, vector<1x128xf32>
    %5 = vector.broadcast %4 : vector<1x128xf32> to vector<112x128xf32>
    %6 = arith.addf %3, %5 : vector<112x128xf32>
    %cst_5 = arith.constant 0.000000e+00 : f32
    %7 = vector.broadcast %cst_5 : f32 to vector<112x128xf32>
    %8 = arith.minimumf %6, %7 : vector<112x128xf32>
    %9 = math.exp %8 : vector<112x128xf32>
    %cst_6 = arith.constant 1.000000e+00 : f32
    %10 = vector.broadcast %cst_6 : f32 to vector<112x128xf32>
    %11 = arith.subf %9, %10 : vector<112x128xf32>
    %cst_7 = arith.constant 1.67326319 : f32
    %12 = vector.broadcast %cst_7 : f32 to vector<112x128xf32>
    %13 = arith.mulf %12, %11 : vector<112x128xf32>
    %cst_8 = arith.constant 0.000000e+00 : f32
    %14 = vector.broadcast %cst_8 : f32 to vector<112x128xf32>
    %15 = arith.cmpf ogt, %6, %14 : vector<112x128xf32>
    %16 = arith.select %15, %6, %13 : vector<112x128xi1>, vector<112x128xf32>
    %cst_9 = arith.constant 1.05070102 : f32
    %17 = vector.broadcast %cst_9 : f32 to vector<112x128xf32>
    %18 = arith.mulf %17, %16 : vector<112x128xf32>
    %19 = arith.truncf %18 : vector<112x128xf32> to vector<112x128xbf16>
    %c0_10 = arith.constant 0 : index
    %c0_11 = arith.constant 0 : index
    %20 = vector.load %arg4[%c0_10, %c0_11] : memref<128x128xbf16, #tpu.memory_space<vmem>>, vector<128x128xbf16>
    %cst_12 = arith.constant dense<0.000000e+00> : vector<112x128xf32>
    %21 = tpu.matmul %19, %20, %cst_12 {dimension_numbers = #tpu.dot_dimension_numbers<[1], [0], [0], [1], [0, 0, 1, 1], [], []>} : vector<112x128xbf16>, vector<128x128xbf16>, vector<112x128xf32> -> vector<112x128xf32>
    %c0_13 = arith.constant 0 : index
    %c0_14 = arith.constant 0 : index
    %22 = vector.load %arg5[%c0_13, %c0_14] : memref<1x128xf32, #tpu.memory_space<vmem>>, vector<1x128xf32>
    %23 = vector.broadcast %22 : vector<1x128xf32> to vector<112x128xf32>
    %24 = arith.addf %21, %23 : vector<112x128xf32>
    %cst_15 = arith.constant 0.000000e+00 : f32
    %25 = vector.broadcast %cst_15 : f32 to vector<112x128xf32>
    %26 = arith.minimumf %24, %25 : vector<112x128xf32>
    %27 = math.exp %26 : vector<112x128xf32>
    %cst_16 = arith.constant 1.000000e+00 : f32
    %28 = vector.broadcast %cst_16 : f32 to vector<112x128xf32>
    %29 = arith.subf %27, %28 : vector<112x128xf32>
    %cst_17 = arith.constant 1.67326319 : f32
    %30 = vector.broadcast %cst_17 : f32 to vector<112x128xf32>
    %31 = arith.mulf %30, %29 : vector<112x128xf32>
    %cst_18 = arith.constant 0.000000e+00 : f32
    %32 = vector.broadcast %cst_18 : f32 to vector<112x128xf32>
    %33 = arith.cmpf ogt, %24, %32 : vector<112x128xf32>
    %34 = arith.select %33, %24, %31 : vector<112x128xi1>, vector<112x128xf32>
    %cst_19 = arith.constant 1.05070102 : f32
    %35 = vector.broadcast %cst_19 : f32 to vector<112x128xf32>
    %36 = arith.mulf %35, %34 : vector<112x128xf32>
    %37 = arith.truncf %36 : vector<112x128xf32> to vector<112x128xbf16>
    %c0_20 = arith.constant 0 : index
    %c0_21 = arith.constant 0 : index
    %38 = vector.load %arg6[%c0_20, %c0_21] : memref<128x128xbf16, #tpu.memory_space<vmem>>, vector<128x128xbf16>
    %cst_22 = arith.constant dense<0.000000e+00> : vector<112x128xf32>
    %39 = tpu.matmul %37, %38, %cst_22 {dimension_numbers = #tpu.dot_dimension_numbers<[1], [0], [0], [1], [0, 0, 1, 1], [], []>} : vector<112x128xbf16>, vector<128x128xbf16>, vector<112x128xf32> -> vector<112x128xf32>
    %c0_23 = arith.constant 0 : index
    %c0_24 = arith.constant 0 : index
    %40 = vector.load %arg7[%c0_23, %c0_24] : memref<1x128xf32, #tpu.memory_space<vmem>>, vector<1x128xf32>
    %41 = vector.broadcast %40 : vector<1x128xf32> to vector<112x128xf32>
    %42 = arith.addf %39, %41 : vector<112x128xf32>
    %cst_25 = arith.constant 0.000000e+00 : f32
    %43 = vector.broadcast %cst_25 : f32 to vector<112x128xf32>
    %44 = arith.minimumf %42, %43 : vector<112x128xf32>
    %45 = math.exp %44 : vector<112x128xf32>
    %cst_26 = arith.constant 1.000000e+00 : f32
    %46 = vector.broadcast %cst_26 : f32 to vector<112x128xf32>
    %47 = arith.subf %45, %46 : vector<112x128xf32>
    %cst_27 = arith.constant 1.67326319 : f32
    %48 = vector.broadcast %cst_27 : f32 to vector<112x128xf32>
    %49 = arith.mulf %48, %47 : vector<112x128xf32>
    %cst_28 = arith.constant 0.000000e+00 : f32
    %50 = vector.broadcast %cst_28 : f32 to vector<112x128xf32>
    %51 = arith.cmpf ogt, %42, %50 : vector<112x128xf32>
    %52 = arith.select %51, %42, %49 : vector<112x128xi1>, vector<112x128xf32>
    %cst_29 = arith.constant 1.05070102 : f32
    %53 = vector.broadcast %cst_29 : f32 to vector<112x128xf32>
    %54 = arith.mulf %53, %52 : vector<112x128xf32>
    %55 = arith.truncf %54 : vector<112x128xf32> to vector<112x128xbf16>
    %c0_30 = arith.constant 0 : index
    %c0_31 = arith.constant 0 : index
    %56 = vector.load %arg8[%c0_30, %c0_31] : memref<128x128xbf16, #tpu.memory_space<vmem>>, vector<128x128xbf16>
    %cst_32 = arith.constant dense<0.000000e+00> : vector<112x128xf32>
    %57 = tpu.matmul %55, %56, %cst_32 {dimension_numbers = #tpu.dot_dimension_numbers<[1], [0], [0], [1], [0, 0, 1, 1], [], []>} : vector<112x128xbf16>, vector<128x128xbf16>, vector<112x128xf32> -> vector<112x128xf32>
    %c0_33 = arith.constant 0 : index
    %c0_34 = arith.constant 0 : index
    %58 = vector.load %arg9[%c0_33, %c0_34] : memref<1x128xf32, #tpu.memory_space<vmem>>, vector<1x128xf32>
    %59 = vector.broadcast %58 : vector<1x128xf32> to vector<112x128xf32>
    %60 = arith.addf %57, %59 : vector<112x128xf32>
    %c0_35 = arith.constant 0 : index
    %c0_36 = arith.constant 0 : index
    %61 = vector.load %arg10[%c0_35, %c0_36] : memref<112x128xf32, #tpu.memory_space<vmem>>, vector<112x128xf32>
    tpu.vector_store %arg10[%c0_35, %c0_36], %60 {strides = array<i32>} : memref<112x128xf32, #tpu.memory_space<vmem>>, vector<112x128xf32>,
    return
  }
  func.func @transform_0(%arg0: i32) -> (i32, i32) {
    %c0_i32 = arith.constant 0 : i32
    %c0_i32_0 = arith.constant 0 : i32
    return %arg0, %c0_i32 : i32, i32
  }
  func.func @transform_1(%arg0: i32) -> (i32, i32) {
    %c0_i32 = arith.constant 0 : i32
    %c0_i32_0 = arith.constant 0 : i32
    %c0_i32_1 = arith.constant 0 : i32
    return %c0_i32, %c0_i32_0 : i32, i32
  }
  func.func @transform_2(%arg0: i32) -> (i32, i32) {
    %c0_i32 = arith.constant 0 : i32
    %c0_i32_0 = arith.constant 0 : i32
    %c0_i32_1 = arith.constant 0 : i32
    return %c0_i32, %c0_i32_0 : i32, i32
  }
  func.func @transform_3(%arg0: i32) -> (i32, i32) {
    %c0_i32 = arith.constant 0 : i32
    %c0_i32_0 = arith.constant 0 : i32
    %c0_i32_1 = arith.constant 0 : i32
    return %c0_i32, %c0_i32_0 : i32, i32
  }
  func.func @transform_4(%arg0: i32) -> (i32, i32) {
    %c0_i32 = arith.constant 0 : i32
    %c0_i32_0 = arith.constant 0 : i32
    %c0_i32_1 = arith.constant 0 : i32
    return %c0_i32, %c0_i32_0 : i32, i32
  }
  func.func @transform_5(%arg0: i32) -> (i32, i32) {
    %c0_i32 = arith.constant 0 : i32
    %c0_i32_0 = arith.constant 0 : i32
    %c0_i32_1 = arith.constant 0 : i32
    return %c0_i32, %c0_i32_0 : i32, i32
  }
  func.func @transform_6(%arg0: i32) -> (i32, i32) {
    %c0_i32 = arith.constant 0 : i32
    %c0_i32_0 = arith.constant 0 : i32
    %c0_i32_1 = arith.constant 0 : i32
    return %c0_i32, %c0_i32_0 : i32, i32
  }
  func.func @transform_7(%arg0: i32) -> (i32, i32) {
    %c0_i32 = arith.constant 0 : i32
    %c0_i32_0 = arith.constant 0 : i32
    %c0_i32_1 = arith.constant 0 : i32
    return %c0_i32, %c0_i32_0 : i32, i32
  }
  func.func @transform_8(%arg0: i32) -> (i32, i32) {
    %c0_i32 = arith.constant 0 : i32
    %c0_i32_0 = arith.constant 0 : i32
    %c0_i32_1 = arith.constant 0 : i32
    return %c0_i32, %c0_i32_0 : i32, i32
  }
  func.func @transform_9(%arg0: i32) -> (i32, i32) {
    %c0_i32 = arith.constant 0 : i32
    %c0_i32_0 = arith.constant 0 : i32
    return %arg0, %c0_i32 : i32, i32
  }
}

</mosaic_0001>

<llo_original>
// kernel: _lambda_.1
$region0: #{_lambda_.1}
  #allocation0 [shape = 'u32[]', space=smem, size = 0x4, offset = 0x4, fixed_abs, tag = 'smem constant byte address 0x4 - core index']
  #allocation1 [shape = 'u32[144,128]{1,0:T(1,128)}', space=vmem, size = 0x12000, scoped, tag = 'internal scratch']
  %s0 = inlined_call_operand.vmem [shape: f32[224,32], index: 0, kind: input, shape index: {}]
  %s1 = inlined_call_operand.vmem [shape: bf16[32,128], index: 1, kind: input, shape index: {}]
  %s2 = inlined_call_operand.vmem [shape: f32[1,128], index: 2, kind: input, shape index: {}]
  %s3 = inlined_call_operand.vmem [shape: bf16[128,128], index: 3, kind: input, shape index: {}]
  %s4 = inlined_call_operand.vmem [shape: f32[1,128], index: 4, kind: input, shape index: {}]
  %s5 = inlined_call_operand.vmem [shape: bf16[128,128], index: 5, kind: input, shape index: {}]
  %s6 = inlined_call_operand.vmem [shape: f32[1,128], index: 6, kind: input, shape index: {}]
  %s7 = inlined_call_operand.vmem [shape: bf16[128,128], index: 7, kind: input, shape index: {}]
  %s8 = inlined_call_operand.vmem [shape: f32[1,128], index: 8, kind: input, shape index: {}]
  %s9 = inlined_call_operand.vmem [shape: f32[224,128], index: 9, kind: output, shape index: {}]
  %s10 = sld [smem:[#allocation0]]
  $region69: #{_lambda_.1} parent=0
    _
  %s12 = ssub.s32 1, %s10
  %s13 = scalar_select 0, %s12, %s10
  loop: start=0, step=1, limit=4
  $region2: #{_lambda_.1} parent=0 // loop_pre_header
    _
  $region3: #{_lambda_.1} parent=0 // loop_header
    %s15 = sphi 0, %s19
    %p16 = scmp.ge.s32.totalorder %s15, 4
    %s25 = sphi 0, %s27
    %s28 = sphi 0, %s25
    %s29 = sphi 0, %s28
    %s45 = sphi 0, %s29
    %s49 = sphi 0, %s49
    %s51 = sphi 0, %s49
    %s52 = sphi 0, %s51
    %s66 = sphi 0, %s52
    %s70 = sphi 0, %s70
    %s72 = sphi 0, %s70
    %s73 = sphi 0, %s72
    %s87 = sphi 0, %s73
    %s91 = sphi 0, %s91
    %s93 = sphi 0, %s91
    %s94 = sphi 0, %s93
    %s108 = sphi 0, %s94
    %s112 = sphi 0, %s112
    %s114 = sphi 0, %s112
    %s115 = sphi 0, %s114
    %s129 = sphi 0, %s115
    %s133 = sphi 0, %s133
    %s135 = sphi 0, %s133
    %s136 = sphi 0, %s135
    %s150 = sphi 0, %s136
    %s154 = sphi 0, %s154
    %s156 = sphi 0, %s154
    %s157 = sphi 0, %s156
    %s171 = sphi 0, %s157
    %s175 = sphi 0, %s175
    %s177 = sphi 0, %s175
    %s178 = sphi 0, %s177
    %s192 = sphi 0, %s178
    %s196 = sphi 0, %s196
    %s198 = sphi 0, %s196
    %s199 = sphi 0, %s198
    %s213 = sphi 0, %s199
    %s219 = sphi 0, %s221
    %s222 = sphi 0, %s219
    %s223 = sphi 0, %s222
    %s239 = sphi 0, %s223
  $region4: #{_lambda_.1} parent=0 // loop_header_branch
    %18 = sbr.rel (%p16) target = $region8
  $region5: #{_lambda_.1} parent=0 // loop_body
    %s20 = ssub.s32 %s15, 1
    %s21 = ssub.s32 %s15, 2
    %s22 = sadd.s32 %s15, 1
    %s23 = ssub.s32 %s15, %s22
    %p24 = scmp.eq.s32.totalorder %s23, 0
    %s26 = sadd.s32 %s25, 1
    %s27 = scalar_select %p24, %s25, %s26
    %p30 = pneg %p24
    %p31 = scmp.eq.s32.totalorder %s15, 1
    %p32 = por %p30, %p31
    %p33 = scmp.ne.s32.totalorder %s25, %s28
    %p34 = scmp.eq.s32.totalorder %s15, 0
    %p35 = por %p33, %p34
    %p36 = scmp.ne.s32.totalorder %s25, %s28
    %p37 = scmp.eq.s32.totalorder %s20, 1
    %p38 = por %p36, %p37
    %p39 = scmp.ne.s32.totalorder %s28, %s29
    %p40 = scmp.eq.s32.totalorder %s20, 0
    %p41 = por %p39, %p40
    %p42 = scmp.ne.s32.totalorder %s28, %s29
    %p43 = scmp.eq.s32.totalorder %s21, 1
    %p44 = por %p42, %p43
    %p46 = scmp.ne.s32.totalorder %s29, %s45
    %p47 = scmp.eq.s32.totalorder %s21, 0
    %p48 = por %p46, %p47
    %s50 = sadd.s32 %s49, 1
    %p53 = scmp.eq.s32.totalorder %s15, 1
    %p54 = scmp.ne.s32.totalorder %s49, %s51
    %p55 = scmp.eq.s32.totalorder %s15, 0
    %p56 = por %p54, %p55
    %p57 = scmp.ne.s32.totalorder %s49, %s51
    %p58 = scmp.eq.s32.totalorder %s20, 1
    %p59 = por %p57, %p58
    %p60 = scmp.ne.s32.totalorder %s51, %s52
    %p61 = scmp.eq.s32.totalorder %s20, 0
    %p62 = por %p60, %p61
    %p63 = scmp.ne.s32.totalorder %s51, %s52
    %p64 = scmp.eq.s32.totalorder %s21, 1
    %p65 = por %p63, %p64
    %p67 = scmp.ne.s32.totalorder %s52, %s66
    %p68 = scmp.eq.s32.totalorder %s21, 0
    %p69 = por %p67, %p68
    %s71 = sadd.s32 %s70, 1
    %p74 = scmp.eq.s32.totalorder %s15, 1
    %p75 = scmp.ne.s32.totalorder %s70, %s72
    %p76 = scmp.eq.s32.totalorder %s15, 0
    %p77 = por %p75, %p76
    %p78 = scmp.ne.s32.totalorder %s70, %s72
    %p79 = scmp.eq.s32.totalorder %s20, 1
    %p80 = por %p78, %p79
    %p81 = scmp.ne.s32.totalorder %s72, %s73
    %p82 = scmp.eq.s32.totalorder %s20, 0
    %p83 = por %p81, %p82
    %p84 = scmp.ne.s32.totalorder %s72, %s73
    %p85 = scmp.eq.s32.totalorder %s21, 1
    %p86 = por %p84, %p85
    %p88 = scmp.ne.s32.totalorder %s73, %s87
    %p89 = scmp.eq.s32.totalorder %s21, 0
    %p90 = por %p88, %p89
    %s92 = sadd.s32 %s91, 1
    %p95 = scmp.eq.s32.totalorder %s15, 1
    %p96 = scmp.ne.s32.totalorder %s91, %s93
    %p97 = scmp.eq.s32.totalorder %s15, 0
    %p98 = por %p96, %p97
    %p99 = scmp.ne.s32.totalorder %s91, %s93
    %p100 = scmp.eq.s32.totalorder %s20, 1
    %p101 = por %p99, %p100
    %p102 = scmp.ne.s32.totalorder %s93, %s94
    %p103 = scmp.eq.s32.totalorder %s20, 0
    %p104 = por %p102, %p103
    %p105 = scmp.ne.s32.totalorder %s93, %s94
    %p106 = scmp.eq.s32.totalorder %s21, 1
    %p107 = por %p105, %p106
    %p109 = scmp.ne.s32.totalorder %s94, %s108
    %p110 = scmp.eq.s32.totalorder %s21, 0
    %p111 = por %p109, %p110
    %s113 = sadd.s32 %s112, 1
    %p116 = scmp.eq.s32.totalorder %s15, 1
    %p117 = scmp.ne.s32.totalorder %s112, %s114
    %p118 = scmp.eq.s32.totalorder %s15, 0
    %p119 = por %p117, %p118
    %p120 = scmp.ne.s32.totalorder %s112, %s114
    %p121 = scmp.eq.s32.totalorder %s20, 1
    %p122 = por %p120, %p121
    %p123 = scmp.ne.s32.totalorder %s114, %s115
    %p124 = scmp.eq.s32.totalorder %s20, 0
    %p125 = por %p123, %p124
    %p126 = scmp.ne.s32.totalorder %s114, %s115
    %p127 = scmp.eq.s32.totalorder %s21, 1
    %p128 = por %p126, %p127
    %p130 = scmp.ne.s32.totalorder %s115, %s129
    %p131 = scmp.eq.s32.totalorder %s21, 0
    %p132 = por %p130, %p131
    %s134 = sadd.s32 %s133, 1
    %p137 = scmp.eq.s32.totalorder %s15, 1
    %p138 = scmp.ne.s32.totalorder %s133, %s135
    %p139 = scmp.eq.s32.totalorder %s15, 0
    %p140 = por %p138, %p139
    %p141 = scmp.ne.s32.totalorder %s133, %s135
    %p142 = scmp.eq.s32.totalorder %s20, 1
    %p143 = por %p141, %p142
    %p144 = scmp.ne.s32.totalorder %s135, %s136
    %p145 = scmp.eq.s32.totalorder %s20, 0
    %p146 = por %p144, %p145
    %p147 = scmp.ne.s32.totalorder %s135, %s136
    %p148 = scmp.eq.s32.totalorder %s21, 1
    %p149 = por %p147, %p148
    %p151 = scmp.ne.s32.totalorder %s136, %s150
    %p152 = scmp.eq.s32.totalorder %s21, 0
    %p153 = por %p151, %p152
    %s155 = sadd.s32 %s154, 1
    %p158 = scmp.eq.s32.totalorder %s15, 1
    %p159 = scmp.ne.s32.totalorder %s154, %s156
    %p160 = scmp.eq.s32.totalorder %s15, 0
    %p161 = por %p159, %p160
    %p162 = scmp.ne.s32.totalorder %s154, %s156
    %p163 = scmp.eq.s32.totalorder %s20, 1
    %p164 = por %p162, %p163
    %p165 = scmp.ne.s32.totalorder %s156, %s157
    %p166 = scmp.eq.s32.totalorder %s20, 0
    %p167 = por %p165, %p166
    %p168 = scmp.ne.s32.totalorder %s156, %s157
    %p169 = scmp.eq.s32.totalorder %s21, 1
    %p170 = por %p168, %p169
    %p172 = scmp.ne.s32.totalorder %s157, %s171
    %p173 = scmp.eq.s32.totalorder %s21, 0
    %p174 = por %p172, %p173
    %s176 = sadd.s32 %s175, 1
    %p179 = scmp.eq.s32.totalorder %s15, 1
    %p180 = scmp.ne.s32.totalorder %s175, %s177
    %p181 = scmp.eq.s32.totalorder %s15, 0
    %p182 = por %p180, %p181
    %p183 = scmp.ne.s32.totalorder %s175, %s177
    %p184 = scmp.eq.s32.totalorder %s20, 1
    %p185 = por %p183, %p184
    %p186 = scmp.ne.s32.totalorder %s177, %s178
    %p187 = scmp.eq.s32.totalorder %s20, 0
    %p188 = por %p186, %p187
    %p189 = scmp.ne.s32.totalorder %s177, %s178
    %p190 = scmp.eq.s32.totalorder %s21, 1
    %p191 = por %p189, %p190
    %p193 = scmp.ne.s32.totalorder %s178, %s192
    %p194 = scmp.eq.s32.totalorder %s21, 0
    %p195 = por %p193, %p194
    %s197 = sadd.s32 %s196, 1
    %p200 = scmp.eq.s32.totalorder %s15, 1
    %p201 = scmp.ne.s32.totalorder %s196, %s198
    %p202 = scmp.eq.s32.totalorder %s15, 0
    %p203 = por %p201, %p202
    %p204 = scmp.ne.s32.totalorder %s196, %s198
    %p205 = scmp.eq.s32.totalorder %s20, 1
    %p206 = por %p204, %p205
    %p207 = scmp.ne.s32.totalorder %s198, %s199
    %p208 = scmp.eq.s32.totalorder %s20, 0
    %p209 = por %p207, %p208
    %p210 = scmp.ne.s32.totalorder %s198, %s199
    %p211 = scmp.eq.s32.totalorder %s21, 1
    %p212 = por %p210, %p211
    %p214 = scmp.ne.s32.totalorder %s199, %s213
    %p215 = scmp.eq.s32.totalorder %s21, 0
    %p216 = por %p214, %p215
    %s217 = ssub.s32 %s15, %s22
    %p218 = scmp.eq.s32.totalorder %s217, 0
    %s220 = sadd.s32 %s219, 1
    %s221 = scalar_select %p218, %s219, %s220
    %p224 = pneg %p218
    %p225 = scmp.eq.s32.totalorder %s15, 1
    %p226 = por %p224, %p225
    %p227 = scmp.ne.s32.totalorder %s219, %s222
    %p228 = scmp.eq.s32.totalorder %s15, 0
    %p229 = por %p227, %p228
    %p230 = scmp.ne.s32.totalorder %s219, %s222
    %p231 = scmp.eq.s32.totalorder %s20, 1
    %p232 = por %p230, %p231
    %p233 = scmp.ne.s32.totalorder %s222, %s223
    %p234 = scmp.eq.s32.totalorder %s20, 0
    %p235 = por %p233, %p234
    %p236 = scmp.ne.s32.totalorder %s222, %s223
    %p237 = scmp.eq.s32.totalorder %s21, 1
    %p238 = por %p236, %p237
    %p240 = scmp.ne.s32.totalorder %s223, %s239
    %p241 = scmp.eq.s32.totalorder %s21, 0
    %p242 = por %p240, %p241
    %p243 = scmp.le.s32.totalorder 1, %s15
    %p244 = scmp.lt.s32.totalorder %s15, 3
    %p245 = pnand %p243, %p244
    %p246 = pneg %p245
    // Predicated region
    $region9: #{_lambda_.1} parent=5 // pred_check
      _
    $region10: #{_lambda_.1} parent=5 // pred_check_branch
      %248 = sbr.rel (%p245) target = $region12
    $region11: #{_lambda_.1} parent=5 // pred_region
      %s249 = ssub.s32 %s15, 1
      // Predicated region
      $region13: #{_lambda_.1} parent=11 // pred_check
        %p250 = pneg %p62
      $region14: #{_lambda_.1} parent=11 // pred_check_branch
        %252 = sbr.rel (%p250) target = $region16
      $region15: #{_lambda_.1} parent=11 // pred_region
        _
      $region16: #{_lambda_.1} parent=11 // pred_fallthru
        _
      // Predicated region
      $region17: #{_lambda_.1} parent=11 // pred_check
        %p253 = pneg %p83
      $region18: #{_lambda_.1} parent=11 // pred_check_branch
        %255 = sbr.rel (%p253) target = $region20
      $region19: #{_lambda_.1} parent=11 // pred_region
        _
      $region20: #{_lambda_.1} parent=11 // pred_fallthru
        _
      // Predicated region
      $region21: #{_lambda_.1} parent=11 // pred_check
        %p256 = pneg %p104
      $region22: #{_lambda_.1} parent=11 // pred_check_branch
        %258 = sbr.rel (%p256) target = $region24
      $region23: #{_lambda_.1} parent=11 // pred_region
        _
      $region24: #{_lambda_.1} parent=11 // pred_fallthru
        _
      // Predicated region
      $region25: #{_lambda_.1} parent=11 // pred_check
        %p259 = pneg %p125
      $region26: #{_lambda_.1} parent=11 // pred_check_branch
        %261 = sbr.rel (%p259) target = $region28
      $region27: #{_lambda_.1} parent=11 // pred_region
        _
      $region28: #{_lambda_.1} parent=11 // pred_fallthru
        _
      // Predicated region
      $region29: #{_lambda_.1} parent=11 // pred_check
        %p262 = pneg %p146
      $region30: #{_lambda_.1} parent=11 // pred_check_branch
        %264 = sbr.rel (%p262) target = $region32
      $region31: #{_lambda_.1} parent=11 // pred_region
        _
      $region32: #{_lambda_.1} parent=11 // pred_fallthru
        _
      // Predicated region
      $region33: #{_lambda_.1} parent=11 // pred_check
        %p265 = pneg %p167
      $region34: #{_lambda_.1} parent=11 // pred_check_branch
        %267 = sbr.rel (%p265) target = $region36
      $region35: #{_lambda_.1} parent=11 // pred_region
        _
      $region36: #{_lambda_.1} parent=11 // pred_fallthru
        _
      // Predicated region
      $region37: #{_lambda_.1} parent=11 // pred_check
        %p268 = pneg %p188
      $region38: #{_lambda_.1} parent=11 // pred_check_branch
        %270 = sbr.rel (%p268) target = $region40
      $region39: #{_lambda_.1} parent=11 // pred_region
        _
      $region40: #{_lambda_.1} parent=11 // pred_fallthru
        _
      // Predicated region
      $region41: #{_lambda_.1} parent=11 // pred_check
        %p271 = pneg %p209
      $region42: #{_lambda_.1} parent=11 // pred_check_branch
        %273 = sbr.rel (%p271) target = $region44
      $region43: #{_lambda_.1} parent=11 // pred_region
        _
      $region44: #{_lambda_.1} parent=11 // pred_fallthru
        _
    $region12: #{_lambda_.1} parent=5 // pred_fallthru
      _
    %p274 = scmp.lt.s32.totalorder %s15, 2
    // Predicated region
    $region45: #{_lambda_.1} parent=5 // pred_check
      %p275 = pneg %p274
    $region46: #{_lambda_.1} parent=5 // pred_check_branch
      %277 = sbr.rel (%p275) target = $region48
    $region47: #{_lambda_.1} parent=5 // pred_region
      // Predicated region
      $region49: #{_lambda_.1} parent=47 // pred_check
        %p278 = pneg %p35
      $region50: #{_lambda_.1} parent=47 // pred_check_branch
        %280 = sbr.rel (%p278) target = $region52
      $region51: #{_lambda_.1} parent=47 // pred_region
        %s281 = smul.u32 14, %s15
        %p282 = scmp.lt.s32.totalorder %s281, 27
        %s283 = scalar_select %p282, %s281, 27
        %s284 = smul.addr %s283, 8
        %s285 = scalar_lea.vmem %s0, %s284
        %s286 = smul.u32 14, %s15
      $region52: #{_lambda_.1} parent=47 // pred_fallthru
        _
    $region48: #{_lambda_.1} parent=5 // pred_fallthru
      _
    %p287 = scmp.le.s32.totalorder 1, %s15
    %p288 = scmp.lt.s32.totalorder %s15, 3
    %p289 = pnand %p287, %p288
    %p290 = pneg %p289
    // Predicated region
    $region53: #{_lambda_.1} parent=5 // pred_check
      _
    $region54: #{_lambda_.1} parent=5 // pred_check_branch
      %292 = sbr.rel (%p289) target = $region56
    $region55: #{_lambda_.1} parent=5 // pred_region
      %s293 = ssub.s32 %s15, 1
      %s294 = smul.u32 14, %s20
      %p295 = scmp.lt.s32.totalorder %s294, 27
      %s296 = scalar_select %p295, %s294, 27
      %s297 = smul.addr %s296, 8
      %s298 = scalar_lea.vmem %s0, %s297
      %p299 = pneg %p41
      %p300 = pneg %p38
      %p301 = pneg %p62
      %p302 = pneg %p59
      %p303 = pneg %p83
      %p304 = pneg %p80
      %p305 = pneg %p104
      %p306 = pneg %p101
      %p307 = pneg %p125
      %p308 = pneg %p122
      %p309 = pneg %p146
      %p310 = pneg %p143
      %p311 = pneg %p167
      %p312 = pneg %p164
      %p313 = pneg %p188
      %p314 = pneg %p185
      %p315 = pneg %p209
      %p316 = pneg %p206
      %p317 = pneg %p235
      %p318 = pneg %p232
      %s319 = smul.u32 14, %s20
      %p320 = scmp.lt.s32.totalorder %s319, 27
      %s321 = scalar_select %p320, %s319, 27
      %s322 = smul.addr %s321, 8
      %s323 = scalar_lea.vmem %s9, %s322
      %s324 = smul.u32 14, %s20
      %p325 = scmp.lt.s32.totalorder %s324, 27
      %s326 = scalar_select %p325, %s324, 27
      %s327 = smul.addr %s326, 8
      %s328 = scalar_lea.vmem %s0, %s327
      %s329 = smul.u32 14, %s20
      %s330 = smul.u32 14, %s20
      %p331 = scmp.lt.s32.totalorder %s330, 27
      %s332 = scalar_select %p331, %s330, 27
      %s333 = smul.addr %s332, 8
      %s334 = scalar_lea.vmem %s9, %s333
      %s335 = smul.u32 14, %s20
      %v337 = vld [vmem:[%s328] sm:$0xff]
      %v338 = vld [vmem:[%s328 + $0x8] sm:$0xff]
      %v339 = vld [vmem:[%s328 + $0x10] sm:$0xff]
      %v340 = vld [vmem:[%s328 + $0x18] sm:$0xff]
      %v341 = vld [vmem:[%s328 + $0x20] sm:$0xff]
      %v342 = vld [vmem:[%s328 + $0x28] sm:$0xff]
      %v343 = vld [vmem:[%s328 + $0x30] sm:$0xff]
      %v344 = vld [vmem:[%s328 + $0x38] sm:$0xff]
      %v345 = vld [vmem:[%s328 + $0x40] sm:$0xff]
      %v346 = vld [vmem:[%s328 + $0x48] sm:$0xff]
      %v347 = vld [vmem:[%s328 + $0x50] sm:$0xff]
      %v348 = vld [vmem:[%s328 + $0x58] sm:$0xff]
      %v349 = vld [vmem:[%s328 + $0x60] sm:$0xff]
      %v350 = vld [vmem:[%s328 + $0x68] sm:$0xff]
      %v351 = vpack.c.bf16 %v338, %v337
      %v352 = vpack.c.bf16 %v340, %v339
      %v353 = vpack.c.bf16 %v342, %v341
      %v354 = vpack.c.bf16 %v344, %v343
      %v355 = vpack.c.bf16 %v346, %v345
      %v356 = vpack.c.bf16 %v348, %v347
      %v357 = vpack.c.bf16 %v350, %v349
      %v358 = vld [vmem:[%s1] sm:$0xf]
      %v359 = vld [vmem:[%s1 + $0x4] sm:$0xf]
      %v360 = vld [vmem:[%s1 + $0x8] sm:$0xf]
      %v361 = vld [vmem:[%s1 + $0xc] sm:$0xf]
      %v362 = vld [vmem:[%s2] sm:$0x1]
      %v364 = vlaneseq
      %v365 = vshrl.u32 %v364, 7
      %v366 = vsub.s32 0, %v365
      %v367 = vrot.slane %v362, %v366
      %v373 = vunpack.c.l.b16 %v358
      %v374 = vunpack.c.l.b16 %v359
      %v375 = vunpack.c.l.b16 %v360
      %v376 = vunpack.c.l.b16 %v361
      %v377 = vpack.c.b16 %v374, %v373
      %v378 = vpack.c.b16 %v376, %v375
      %vm381 = vcmask 261120
      %v383 = vsel %vm381, %v351, 0
      %v386 = vsel %vm381, %v352, 0
      %v389 = vsel %vm381, %v353, 0
      %v392 = vsel %vm381, %v354, 0
      %v395 = vsel %vm381, %v355, 0
      %v398 = vsel %vm381, %v356, 0
      %v401 = vsel %vm381, %v357, 0
      %403 = vmatprep.subr.bf16.mxu0 0
      %404 = vmatpush1.bf16.msra.mxu0 %v377
      %405 = vmatprep.subr.bf16.mxu0 0
      %406 = vmatpush1.bf16.msra.mxu0 %v378
      %407 = vmatprep.subr.bf16.mxu0 0
      %408 = vmatpush1.bf16.msra.mxu0 0
      %409 = vmatprep.subr.bf16.mxu0 0
      %410 = vmatpush1.bf16.msra.mxu0 0
      %411 = vmatprep.subr.bf16.mxu0 0
      %412 = vmatpush1.bf16.msra.mxu0 0
      %413 = vmatprep.subr.bf16.mxu0 0
      %414 = vmatpush1.bf16.msra.mxu0 0
      %415 = vmatprep.subr.bf16.mxu0 0
      %416 = vmatpush1.bf16.msra.mxu0 0
      %417 = vmatprep.subr.bf16.mxu0 0
      %418 = vmatpush1.bf16.msra.mxu0 0
      %419 = vmatprep.subr.bf16.mxu0 0
      %420 = vmatpush1.bf16.msra.mxu0 0
      %421 = vmatprep.subr.bf16.mxu0 0
      %422 = vmatpush1.bf16.msra.mxu0 0
      %423 = vmatprep.subr.bf16.mxu0 0
      %424 = vmatpush1.bf16.msra.mxu0 0
      %425 = vmatprep.subr.bf16.mxu0 0
      %426 = vmatpush1.bf16.msra.mxu0 0
      %427 = vmatprep.subr.bf16.mxu0 0
      %428 = vmatpush1.bf16.msra.mxu0 0
      %429 = vmatprep.subr.bf16.mxu0 0
      %430 = vmatpush1.bf16.msra.mxu0 0
      %431 = vmatprep.subr.bf16.mxu0 0
      %432 = vmatpush1.bf16.msra.mxu0 0
      %433 = vmatprep.subr.bf16.mxu0 0
      %434 = vmatpush1.bf16.msra.mxu0 0
      %435 = vmatprep.mubr.bf16.mxu0 0
      %436 = vmatmul.mubr.bf16.gmra.mrb[0].mxu0 %v383
      %v437 = vpop.f32.mrb[0].mxu0
      %v438 = vadd.f32 %v367, %v437
      %v439 = vpop.f32.mrb[0].mxu0
      %v440 = vpop.f32.mrb[0].mxu0
      %v441 = vadd.f32 %v367, %v440
      %v442 = vpop.f32.mrb[0].mxu0
      %443 = vmatprep.mubr.bf16.mxu0 0
      %444 = vmatmul.mubr.bf16.gmra.mrb[0].mxu0 %v386
      %v445 = vpop.f32.mrb[0].mxu0
      %v446 = vadd.f32 %v367, %v445
      %v447 = vpop.f32.mrb[0].mxu0
      %v448 = vpop.f32.mrb[0].mxu0
      %v449 = vadd.f32 %v367, %v448
      %v450 = vpop.f32.mrb[0].mxu0
      %451 = vmatprep.mubr.bf16.mxu0 0
      %452 = vmatmul.mubr.bf16.gmra.mrb[0].mxu0 %v389
      %v453 = vpop.f32.mrb[0].mxu0
      %v454 = vadd.f32 %v367, %v453
      %v455 = vpop.f32.mrb[0].mxu0
      %v456 = vpop.f32.mrb[0].mxu0
      %v457 = vadd.f32 %v367, %v456
      %v458 = vpop.f32.mrb[0].mxu0
      %459 = vmatprep.mubr.bf16.mxu0 0
      %460 = vmatmul.mubr.bf16.gmra.mrb[0].mxu0 %v392
      %v461 = vpop.f32.mrb[0].mxu0
      %v462 = vadd.f32 %v367, %v461
      %v463 = vpop.f32.mrb[0].mxu0
      %v464 = vpop.f32.mrb[0].mxu0
      %v465 = vadd.f32 %v367, %v464
      %v466 = vpop.f32.mrb[0].mxu0
      %467 = vmatprep.mubr.bf16.mxu0 0
      %468 = vmatmul.mubr.bf16.gmra.mrb[0].mxu0 %v395
      %v469 = vpop.f32.mrb[0].mxu0
      %v470 = vadd.f32 %v367, %v469
      %v471 = vpop.f32.mrb[0].mxu0
      %v472 = vpop.f32.mrb[0].mxu0
      %v473 = vadd.f32 %v367, %v472
      %v474 = vpop.f32.mrb[0].mxu0
      %475 = vmatprep.mubr.bf16.mxu0 0
      %476 = vmatmul.mubr.bf16.gmra.mrb[0].mxu0 %v398
      %v477 = vpop.f32.mrb[0].mxu0
      %v478 = vadd.f32 %v367, %v477
      %v479 = vpop.f32.mrb[0].mxu0
      %v480 = vpop.f32.mrb[0].mxu0
      %v481 = vadd.f32 %v367, %v480
      %v482 = vpop.f32.mrb[0].mxu0
      %483 = vmatprep.mubr.bf16.mxu0 0
      %484 = vmatmul.mubr.bf16.gmra.mrb[0].mxu0 %v401
      %v485 = vpop.f32.mrb[0].mxu0
      %v486 = vadd.f32 %v367, %v485
      %v487 = vpop.f32.mrb[0].mxu0
      %v488 = vpop.f32.mrb[0].mxu0
      %v489 = vadd.f32 %v367, %v488
      %v490 = vpop.f32.mrb[0].mxu0
      %491 = vdwg.mxu0
      %v492 = vmin.f32 %v438, 0.0
      %v493 = vmin.f32 %v441, 0.0
      %v494 = vmin.f32 %v446, 0.0
      %v495 = vmin.f32 %v449, 0.0
      %v496 = vmin.f32 %v454, 0.0
      %v497 = vmin.f32 %v457, 0.0
      %v498 = vmin.f32 %v462, 0.0
      %v499 = vmin.f32 %v465, 0.0
      %v500 = vmin.f32 %v470, 0.0
      %v501 = vmin.f32 %v473, 0.0
      %v502 = vmin.f32 %v478, 0.0
      %v503 = vmin.f32 %v481, 0.0
      %v504 = vmin.f32 %v486, 0.0
      %v505 = vmin.f32 %v489, 0.0
      %v506 = vmul.f32 %v492, 1.442695
      %v507 = vpow.pop %v506
      %v508 = vmul.f32 %v493, 1.442695
      %v509 = vpow.pop %v508
      %v510 = vmul.f32 %v494, 1.442695
      %v511 = vpow.pop %v510
      %v512 = vmul.f32 %v495, 1.442695
      %v513 = vpow.pop %v512
      %v514 = vmul.f32 %v496, 1.442695
      %v515 = vpow.pop %v514
      %v516 = vmul.f32 %v497, 1.442695
      %v517 = vpow.pop %v516
      %v518 = vmul.f32 %v498, 1.442695
      %v519 = vpow.pop %v518
      %v520 = vmul.f32 %v499, 1.442695
      %v521 = vpow.pop %v520
      %v522 = vmul.f32 %v500, 1.442695
      %v523 = vpow.pop %v522
      %v524 = vmul.f32 %v501, 1.442695
      %v525 = vpow.pop %v524
      %v526 = vmul.f32 %v502, 1.442695
      %v527 = vpow.pop %v526
      %v528 = vmul.f32 %v503, 1.442695
      %v529 = vpow.pop %v528
      %v530 = vmul.f32 %v504, 1.442695
      %v531 = vpow.pop %v530
      %v532 = vmul.f32 %v505, 1.442695
      %v533 = vpow.pop %v532
      %v534 = vsub.f32 %v507, 1.0
      %v535 = vsub.f32 %v509, 1.0
      %v536 = vsub.f32 %v511, 1.0
      %v537 = vsub.f32 %v513, 1.0
      %v538 = vsub.f32 %v515, 1.0
      %v539 = vsub.f32 %v517, 1.0
      %v540 = vsub.f32 %v519, 1.0
      %v541 = vsub.f32 %v521, 1.0
      %v542 = vsub.f32 %v523, 1.0
      %v543 = vsub.f32 %v525, 1.0
      %v544 = vsub.f32 %v527, 1.0
      %v545 = vsub.f32 %v529, 1.0
      %v546 = vsub.f32 %v531, 1.0
      %v547 = vsub.f32 %v533, 1.0
      %v548 = vmul.f32 %v534, 1.6732632
      %v549 = vmul.f32 %v535, 1.6732632
      %v550 = vmul.f32 %v536, 1.6732632
      %v551 = vmul.f32 %v537, 1.6732632
      %v552 = vmul.f32 %v538, 1.6732632
      %v553 = vmul.f32 %v539, 1.6732632
      %v554 = vmul.f32 %v540, 1.6732632
      %v555 = vmul.f32 %v541, 1.6732632
      %v556 = vmul.f32 %v542, 1.6732632
      %v557 = vmul.f32 %v543, 1.6732632
      %v558 = vmul.f32 %v544, 1.6732632
      %v559 = vmul.f32 %v545, 1.6732632
      %v560 = vmul.f32 %v546, 1.6732632
      %v561 = vmul.f32 %v547, 1.6732632
      %vm562 = vcmp.gt.f32.partialorder %v438, 0.0
      %vm563 = vcmp.gt.f32.partialorder %v441, 0.0
      %vm564 = vcmp.gt.f32.partialorder %v446, 0.0
      %vm565 = vcmp.gt.f32.partialorder %v449, 0.0
      %vm566 = vcmp.gt.f32.partialorder %v454, 0.0
      %vm567 = vcmp.gt.f32.partialorder %v457, 0.0
      %vm568 = vcmp.gt.f32.partialorder %v462, 0.0
      %vm569 = vcmp.gt.f32.partialorder %v465, 0.0
      %vm570 = vcmp.gt.f32.partialorder %v470, 0.0
      %vm571 = vcmp.gt.f32.partialorder %v473, 0.0
      %vm572 = vcmp.gt.f32.partialorder %v478, 0.0
      %vm573 = vcmp.gt.f32.partialorder %v481, 0.0
      %vm574 = vcmp.gt.f32.partialorder %v486, 0.0
      %vm575 = vcmp.gt.f32.partialorder %v489, 0.0
      %v576 = vsel %vm562, %v438, %v548
      %v577 = vsel %vm563, %v441, %v549
      %v578 = vsel %vm564, %v446, %v550
      %v579 = vsel %vm565, %v449, %v551
      %v580 = vsel %vm566, %v454, %v552
      %v581 = vsel %vm567, %v457, %v553
      %v582 = vsel %vm568, %v462, %v554
      %v583 = vsel %vm569, %v465, %v555
      %v584 = vsel %vm570, %v470, %v556
      %v585 = vsel %vm571, %v473, %v557
      %v586 = vsel %vm572, %v478, %v558
      %v587 = vsel %vm573, %v481, %v559
      %v588 = vsel %vm574, %v486, %v560
      %v589 = vsel %vm575, %v489, %v561
      %v590 = vmul.f32 %v576, 1.050701
      %v591 = vmul.f32 %v577, 1.050701
      %v592 = vmul.f32 %v578, 1.050701
      %v593 = vmul.f32 %v579, 1.050701
      %v594 = vmul.f32 %v580, 1.050701
      %v595 = vmul.f32 %v581, 1.050701
      %v596 = vmul.f32 %v582, 1.050701
      %v597 = vmul.f32 %v583, 1.050701
      %v598 = vmul.f32 %v584, 1.050701
      %v599 = vmul.f32 %v585, 1.050701
      %v600 = vmul.f32 %v586, 1.050701
      %v601 = vmul.f32 %v587, 1.050701
      %v602 = vmul.f32 %v588, 1.050701
      %v603 = vmul.f32 %v589, 1.050701
      %v604 = vpack.c.bf16 %v591, %v590
      %v605 = vpack.c.bf16 %v593, %v592
      %v606 = vpack.c.bf16 %v595, %v594
      %v607 = vpack.c.bf16 %v597, %v596
      %v608 = vpack.c.bf16 %v599, %v598
      %v609 = vpack.c.bf16 %v601, %v600
      %v610 = vpack.c.bf16 %v603, %v602
      %v611 = vld [vmem:[%s3] sm:$0xf]
      %v612 = vld [vmem:[%s3 + $0x4] sm:$0xf]
      %v613 = vld [vmem:[%s3 + $0x8] sm:$0xf]
      %v614 = vld [vmem:[%s3 + $0xc] sm:$0xf]
      %v615 = vld [vmem:[%s3 + $0x10] sm:$0xf]
      %v616 = vld [vmem:[%s3 + $0x14] sm:$0xf]
      %v617 = vld [vmem:[%s3 + $0x18] sm:$0xf]
      %v618 = vld [vmem:[%s3 + $0x1c] sm:$0xf]
      %v619 = vld [vmem:[%s3 + $0x20] sm:$0xf]
      %v620 = vld [vmem:[%s3 + $0x24] sm:$0xf]
      %v621 = vld [vmem:[%s3 + $0x28] sm:$0xf]
      %v622 = vld [vmem:[%s3 + $0x2c] sm:$0xf]
      %v623 = vld [vmem:[%s3 + $0x30] sm:$0xf]
      %v624 = vld [vmem:[%s3 + $0x34] sm:$0xf]
      %v625 = vld [vmem:[%s3 + $0x38] sm:$0xf]
      %v626 = vld [vmem:[%s3 + $0x3c] sm:$0xf]
      %v627 = vld [vmem:[%s4] sm:$0x1]
      %v629 = vlaneseq
      %v630 = vshrl.u32 %v629, 7
      %v631 = vsub.s32 0, %v630
      %v632 = vrot.slane %v627, %v631
      %v650 = vunpack.c.l.b16 %v611
      %v651 = vunpack.c.l.b16 %v612
      %v652 = vunpack.c.l.b16 %v613
      %v653 = vunpack.c.l.b16 %v614
      %v654 = vunpack.c.l.b16 %v615
      %v655 = vunpack.c.l.b16 %v616
      %v656 = vunpack.c.l.b16 %v617
      %v657 = vunpack.c.l.b16 %v618
      %v658 = vunpack.c.l.b16 %v619
      %v659 = vunpack.c.l.b16 %v620
      %v660 = vunpack.c.l.b16 %v621
      %v661 = vunpack.c.l.b16 %v622
      %v662 = vunpack.c.l.b16 %v623
      %v663 = vunpack.c.l.b16 %v624
      %v664 = vunpack.c.l.b16 %v625
      %v665 = vunpack.c.l.b16 %v626
      %v666 = vpack.c.b16 %v651, %v650
      %v667 = vpack.c.b16 %v653, %v652
      %v668 = vpack.c.b16 %v655, %v654
      %v669 = vpack.c.b16 %v657, %v656
      %v670 = vpack.c.b16 %v659, %v658
      %v671 = vpack.c.b16 %v661, %v660
      %v672 = vpack.c.b16 %v663, %v662
      %v673 = vpack.c.b16 %v665, %v664
      %682 = vmatprep.subr.bf16.mxu0 0
      %683 = vmatpush1.bf16.msra.mxu0 %v666
      %684 = vmatprep.subr.bf16.mxu0 0
      %685 = vmatpush1.bf16.msra.mxu0 %v667
      %686 = vmatprep.subr.bf16.mxu0 0
      %687 = vmatpush1.bf16.msra.mxu0 %v668
      %688 = vmatprep.subr.bf16.mxu0 0
      %689 = vmatpush1.bf16.msra.mxu0 %v669
      %690 = vmatprep.subr.bf16.mxu0 0
      %691 = vmatpush1.bf16.msra.mxu0 %v670
      %692 = vmatprep.subr.bf16.mxu0 0
      %693 = vmatpush1.bf16.msra.mxu0 %v671
      %694 = vmatprep.subr.bf16.mxu0 0
      %695 = vmatpush1.bf16.msra.mxu0 %v672
      %696 = vmatprep.subr.bf16.mxu0 0
      %697 = vmatpush1.bf16.msra.mxu0 %v673
      %698 = vmatprep.subr.bf16.mxu0 0
      %699 = vmatpush1.bf16.msra.mxu0 0
      %700 = vmatprep.subr.bf16.mxu0 0
      %701 = vmatpush1.bf16.msra.mxu0 0
      %702 = vmatprep.subr.bf16.mxu0 0
      %703 = vmatpush1.bf16.msra.mxu0 0
      %704 = vmatprep.subr.bf16.mxu0 0
      %705 = vmatpush1.bf16.msra.mxu0 0
      %706 = vmatprep.subr.bf16.mxu0 0
      %707 = vmatpush1.bf16.msra.mxu0 0
      %708 = vmatprep.subr.bf16.mxu0 0
      %709 = vmatpush1.bf16.msra.mxu0 0
      %710 = vmatprep.subr.bf16.mxu0 0
      %711 = vmatpush1.bf16.msra.mxu0 0
      %712 = vmatprep.subr.bf16.mxu0 0
      %713 = vmatpush1.bf16.msra.mxu0 0
      %714 = vmatprep.mubr.bf16.mxu0 0
      %715 = vmatmul.mubr.bf16.gmra.mrb[0].mxu0 %v604
      %v716 = vpop.f32.mrb[0].mxu0
      %v717 = vadd.f32 %v632, %v716
      %v718 = vpop.f32.mrb[0].mxu0
      %v719 = vpop.f32.mrb[0].mxu0
      %v720 = vadd.f32 %v632, %v719
      %v721 = vpop.f32.mrb[0].mxu0
      %722 = vmatprep.mubr.bf16.mxu0 0
      %723 = vmatmul.mubr.bf16.gmra.mrb[0].mxu0 %v605
      %v724 = vpop.f32.mrb[0].mxu0
      %v725 = vadd.f32 %v632, %v724
      %v726 = vpop.f32.mrb[0].mxu0
      %v727 = vpop.f32.mrb[0].mxu0
      %v728 = vadd.f32 %v632, %v727
      %v729 = vpop.f32.mrb[0].mxu0
      %730 = vmatprep.mubr.bf16.mxu0 0
      %731 = vmatmul.mubr.bf16.gmra.mrb[0].mxu0 %v606
      %v732 = vpop.f32.mrb[0].mxu0
      %v733 = vadd.f32 %v632, %v732
      %v734 = vpop.f32.mrb[0].mxu0
      %v735 = vpop.f32.mrb[0].mxu0
      %v736 = vadd.f32 %v632, %v735
      %v737 = vpop.f32.mrb[0].mxu0
      %738 = vmatprep.mubr.bf16.mxu0 0
      %739 = vmatmul.mubr.bf16.gmra.mrb[0].mxu0 %v607
      %v740 = vpop.f32.mrb[0].mxu0
      %v741 = vadd.f32 %v632, %v740
      %v742 = vpop.f32.mrb[0].mxu0
      %v743 = vpop.f32.mrb[0].mxu0
      %v744 = vadd.f32 %v632, %v743
      %v745 = vpop.f32.mrb[0].mxu0
      %746 = vmatprep.mubr.bf16.mxu0 0
      %747 = vmatmul.mubr.bf16.gmra.mrb[0].mxu0 %v608
      %v748 = vpop.f32.mrb[0].mxu0
      %v749 = vadd.f32 %v632, %v748
      %v750 = vpop.f32.mrb[0].mxu0
      %v751 = vpop.f32.mrb[0].mxu0
      %v752 = vadd.f32 %v632, %v751
      %v753 = vpop.f32.mrb[0].mxu0
      %754 = vmatprep.mubr.bf16.mxu0 0
      %755 = vmatmul.mubr.bf16.gmra.mrb[0].mxu0 %v609
      %v756 = vpop.f32.mrb[0].mxu0
      %v757 = vadd.f32 %v632, %v756
      %v758 = vpop.f32.mrb[0].mxu0
      %v759 = vpop.f32.mrb[0].mxu0
      %v760 = vadd.f32 %v632, %v759
      %v761 = vpop.f32.mrb[0].mxu0
      %762 = vmatprep.mubr.bf16.mxu0 0
      %763 = vmatmul.mubr.bf16.gmra.mrb[0].mxu0 %v610
      %v764 = vpop.f32.mrb[0].mxu0
      %v765 = vadd.f32 %v632, %v764
      %v766 = vpop.f32.mrb[0].mxu0
      %v767 = vpop.f32.mrb[0].mxu0
      %v768 = vadd.f32 %v632, %v767
      %v769 = vpop.f32.mrb[0].mxu0
      %770 = vdwg.mxu0
      %v771 = vmin.f32 %v717, 0.0
      %v772 = vmin.f32 %v720, 0.0
      %v773 = vmin.f32 %v725, 0.0
      %v774 = vmin.f32 %v728, 0.0
      %v775 = vmin.f32 %v733, 0.0
      %v776 = vmin.f32 %v736, 0.0
      %v777 = vmin.f32 %v741, 0.0
      %v778 = vmin.f32 %v744, 0.0
      %v779 = vmin.f32 %v749, 0.0
      %v780 = vmin.f32 %v752, 0.0
      %v781 = vmin.f32 %v757, 0.0
      %v782 = vmin.f32 %v760, 0.0
      %v783 = vmin.f32 %v765, 0.0
      %v784 = vmin.f32 %v768, 0.0
      %v785 = vmul.f32 %v771, 1.442695
      %v786 = vpow.pop %v785
      %v787 = vmul.f32 %v772, 1.442695
      %v788 = vpow.pop %v787
      %v789 = vmul.f32 %v773, 1.442695
      %v790 = vpow.pop %v789
      %v791 = vmul.f32 %v774, 1.442695
      %v792 = vpow.pop %v791
      %v793 = vmul.f32 %v775, 1.442695
      %v794 = vpow.pop %v793
      %v795 = vmul.f32 %v776, 1.442695
      %v796 = vpow.pop %v795
      %v797 = vmul.f32 %v777, 1.442695
      %v798 = vpow.pop %v797
      %v799 = vmul.f32 %v778, 1.442695
      %v800 = vpow.pop %v799
      %v801 = vmul.f32 %v779, 1.442695
      %v802 = vpow.pop %v801
      %v803 = vmul.f32 %v780, 1.442695
      %v804 = vpow.pop %v803
      %v805 = vmul.f32 %v781, 1.442695
      %v806 = vpow.pop %v805
      %v807 = vmul.f32 %v782, 1.442695
      %v808 = vpow.pop %v807
      %v809 = vmul.f32 %v783, 1.442695
      %v810 = vpow.pop %v809
      %v811 = vmul.f32 %v784, 1.442695
      %v812 = vpow.pop %v811
      %v813 = vsub.f32 %v786, 1.0
      %v814 = vsub.f32 %v788, 1.0
      %v815 = vsub.f32 %v790, 1.0
      %v816 = vsub.f32 %v792, 1.0
      %v817 = vsub.f32 %v794, 1.0
      %v818 = vsub.f32 %v796, 1.0
      %v819 = vsub.f32 %v798, 1.0
      %v820 = vsub.f32 %v800, 1.0
      %v821 = vsub.f32 %v802, 1.0
      %v822 = vsub.f32 %v804, 1.0
      %v823 = vsub.f32 %v806, 1.0
      %v824 = vsub.f32 %v808, 1.0
      %v825 = vsub.f32 %v810, 1.0
      %v826 = vsub.f32 %v812, 1.0
      %v827 = vmul.f32 %v813, 1.6732632
      %v828 = vmul.f32 %v814, 1.6732632
      %v829 = vmul.f32 %v815, 1.6732632
      %v830 = vmul.f32 %v816, 1.6732632
      %v831 = vmul.f32 %v817, 1.6732632
      %v832 = vmul.f32 %v818, 1.6732632
      %v833 = vmul.f32 %v819, 1.6732632
      %v834 = vmul.f32 %v820, 1.6732632
      %v835 = vmul.f32 %v821, 1.6732632
      %v836 = vmul.f32 %v822, 1.6732632
      %v837 = vmul.f32 %v823, 1.6732632
      %v838 = vmul.f32 %v824, 1.6732632
      %v839 = vmul.f32 %v825, 1.6732632
      %v840 = vmul.f32 %v826, 1.6732632
      %vm841 = vcmp.gt.f32.partialorder %v717, 0.0
      %vm842 = vcmp.gt.f32.partialorder %v720, 0.0
      %vm843 = vcmp.gt.f32.partialorder %v725, 0.0
      %vm844 = vcmp.gt.f32.partialorder %v728, 0.0
      %vm845 = vcmp.gt.f32.partialorder %v733, 0.0
      %vm846 = vcmp.gt.f32.partialorder %v736, 0.0
      %vm847 = vcmp.gt.f32.partialorder %v741, 0.0
      %vm848 = vcmp.gt.f32.partialorder %v744, 0.0
      %vm849 = vcmp.gt.f32.partialorder %v749, 0.0
      %vm850 = vcmp.gt.f32.partialorder %v752, 0.0
      %vm851 = vcmp.gt.f32.partialorder %v757, 0.0
      %vm852 = vcmp.gt.f32.partialorder %v760, 0.0
      %vm853 = vcmp.gt.f32.partialorder %v765, 0.0
      %vm854 = vcmp.gt.f32.partialorder %v768, 0.0
      %v855 = vsel %vm841, %v717, %v827
      %v856 = vsel %vm842, %v720, %v828
      %v857 = vsel %vm843, %v725, %v829
      %v858 = vsel %vm844, %v728, %v830
      %v859 = vsel %vm845, %v733, %v831
      %v860 = vsel %vm846, %v736, %v832
      %v861 = vsel %vm847, %v741, %v833
      %v862 = vsel %vm848, %v744, %v834
      %v863 = vsel %vm849, %v749, %v835
      %v864 = vsel %vm850, %v752, %v836
      %v865 = vsel %vm851, %v757, %v837
      %v866 = vsel %vm852, %v760, %v838
      %v867 = vsel %vm853, %v765, %v839
      %v868 = vsel %vm854, %v768, %v840
      %v869 = vmul.f32 %v855, 1.050701
      %v870 = vmul.f32 %v856, 1.050701
      %v871 = vmul.f32 %v857, 1.050701
      %v872 = vmul.f32 %v858, 1.050701
      %v873 = vmul.f32 %v859, 1.050701
      %v874 = vmul.f32 %v860, 1.050701
      %v875 = vmul.f32 %v861, 1.050701
      %v876 = vmul.f32 %v862, 1.050701
      %v877 = vmul.f32 %v863, 1.050701
      %v878 = vmul.f32 %v864, 1.050701
      %v879 = vmul.f32 %v865, 1.050701
      %v880 = vmul.f32 %v866, 1.050701
      %v881 = vmul.f32 %v867, 1.050701
      %v882 = vmul.f32 %v868, 1.050701
      %v883 = vpack.c.bf16 %v870, %v869
      %v884 = vpack.c.bf16 %v872, %v871
      %v885 = vpack.c.bf16 %v874, %v873
      %v886 = vpack.c.bf16 %v876, %v875
      %v887 = vpack.c.bf16 %v878, %v877
      %v888 = vpack.c.bf16 %v880, %v879
      %v889 = vpack.c.bf16 %v882, %v881
      %v890 = vld [vmem:[%s5] sm:$0xf]
      %v891 = vld [vmem:[%s5 + $0x4] sm:$0xf]
      %v892 = vld [vmem:[%s5 + $0x8] sm:$0xf]
      %v893 = vld [vmem:[%s5 + $0xc] sm:$0xf]
      %v894 = vld [vmem:[%s5 + $0x10] sm:$0xf]
      %v895 = vld [vmem:[%s5 + $0x14] sm:$0xf]
      %v896 = vld [vmem:[%s5 + $0x18] sm:$0xf]
      %v897 = vld [vmem:[%s5 + $0x1c] sm:$0xf]
      %v898 = vld [vmem:[%s5 + $0x20] sm:$0xf]
      %v899 = vld [vmem:[%s5 + $0x24] sm:$0xf]
      %v900 = vld [vmem:[%s5 + $0x28] sm:$0xf]
      %v901 = vld [vmem:[%s5 + $0x2c] sm:$0xf]
      %v902 = vld [vmem:[%s5 + $0x30] sm:$0xf]
      %v903 = vld [vmem:[%s5 + $0x34] sm:$0xf]
      %v904 = vld [vmem:[%s5 + $0x38] sm:$0xf]
      %v905 = vld [vmem:[%s5 + $0x3c] sm:$0xf]
      %v906 = vld [vmem:[%s6] sm:$0x1]
      %v908 = vlaneseq
      %v909 = vshrl.u32 %v908, 7
      %v910 = vsub.s32 0, %v909
      %v911 = vrot.slane %v906, %v910
      %v929 = vunpack.c.l.b16 %v890
      %v930 = vunpack.c.l.b16 %v891
      %v931 = vunpack.c.l.b16 %v892
      %v932 = vunpack.c.l.b16 %v893
      %v933 = vunpack.c.l.b16 %v894
      %v934 = vunpack.c.l.b16 %v895
      %v935 = vunpack.c.l.b16 %v896
      %v936 = vunpack.c.l.b16 %v897
      %v937 = vunpack.c.l.b16 %v898
      %v938 = vunpack.c.l.b16 %v899
      %v939 = vunpack.c.l.b16 %v900
      %v940 = vunpack.c.l.b16 %v901
      %v941 = vunpack.c.l.b16 %v902
      %v942 = vunpack.c.l.b16 %v903
      %v943 = vunpack.c.l.b16 %v904
      %v944 = vunpack.c.l.b16 %v905
      %v945 = vpack.c.b16 %v930, %v929
      %v946 = vpack.c.b16 %v932, %v931
      %v947 = vpack.c.b16 %v934, %v933
      %v948 = vpack.c.b16 %v936, %v935
      %v949 = vpack.c.b16 %v938, %v937
      %v950 = vpack.c.b16 %v940, %v939
      %v951 = vpack.c.b16 %v942, %v941
      %v952 = vpack.c.b16 %v944, %v943
      %961 = vmatprep.subr.bf16.mxu0 0
      %962 = vmatpush1.bf16.msra.mxu0 %v945
      %963 = vmatprep.subr.bf16.mxu0 0
      %964 = vmatpush1.bf16.msra.mxu0 %v946
      %965 = vmatprep.subr.bf16.mxu0 0
      %966 = vmatpush1.bf16.msra.mxu0 %v947
      %967 = vmatprep.subr.bf16.mxu0 0
      %968 = vmatpush1.bf16.msra.mxu0 %v948
      %969 = vmatprep.subr.bf16.mxu0 0
      %970 = vmatpush1.bf16.msra.mxu0 %v949
      %971 = vmatprep.subr.bf16.mxu0 0
      %972 = vmatpush1.bf16.msra.mxu0 %v950
      %973 = vmatprep.subr.bf16.mxu0 0
      %974 = vmatpush1.bf16.msra.mxu0 %v951
      %975 = vmatprep.subr.bf16.mxu0 0
      %976 = vmatpush1.bf16.msra.mxu0 %v952
      %977 = vmatprep.subr.bf16.mxu0 0
      %978 = vmatpush1.bf16.msra.mxu0 0
      %979 = vmatprep.subr.bf16.mxu0 0
      %980 = vmatpush1.bf16.msra.mxu0 0
      %981 = vmatprep.subr.bf16.mxu0 0
      %982 = vmatpush1.bf16.msra.mxu0 0
      %983 = vmatprep.subr.bf16.mxu0 0
      %984 = vmatpush1.bf16.msra.mxu0 0
      %985 = vmatprep.subr.bf16.mxu0 0
      %986 = vmatpush1.bf16.msra.mxu0 0
      %987 = vmatprep.subr.bf16.mxu0 0
      %988 = vmatpush1.bf16.msra.mxu0 0
      %989 = vmatprep.subr.bf16.mxu0 0
      %990 = vmatpush1.bf16.msra.mxu0 0
      %991 = vmatprep.subr.bf16.mxu0 0
      %992 = vmatpush1.bf16.msra.mxu0 0
      %993 = vmatprep.mubr.bf16.mxu0 0
      %994 = vmatmul.mubr.bf16.gmra.mrb[0].mxu0 %v883
      %v995 = vpop.f32.mrb[0].mxu0
      %v996 = vadd.f32 %v911, %v995
      %v997 = vpop.f32.mrb[0].mxu0
      %v998 = vpop.f32.mrb[0].mxu0
      %v999 = vadd.f32 %v911, %v998
      %v1000 = vpop.f32.mrb[0].mxu0
      %1001 = vmatprep.mubr.bf16.mxu0 0
      %1002 = vmatmul.mubr.bf16.gmra.mrb[0].mxu0 %v884
      %v1003 = vpop.f32.mrb[0].mxu0
      %v1004 = vadd.f32 %v911, %v1003
      %v1005 = vpop.f32.mrb[0].mxu0
      %v1006 = vpop.f32.mrb[0].mxu0
      %v1007 = vadd.f32 %v911, %v1006
      %v1008 = vpop.f32.mrb[0].mxu0
      %1009 = vmatprep.mubr.bf16.mxu0 0
      %1010 = vmatmul.mubr.bf16.gmra.mrb[0].mxu0 %v885
      %v1011 = vpop.f32.mrb[0].mxu0
      %v1012 = vadd.f32 %v911, %v1011
      %v1013 = vpop.f32.mrb[0].mxu0
      %v1014 = vpop.f32.mrb[0].mxu0
      %v1015 = vadd.f32 %v911, %v1014
      %v1016 = vpop.f32.mrb[0].mxu0
      %1017 = vmatprep.mubr.bf16.mxu0 0
      %1018 = vmatmul.mubr.bf16.gmra.mrb[0].mxu0 %v886
      %v1019 = vpop.f32.mrb[0].mxu0
      %v1020 = vadd.f32 %v911, %v1019
      %v1021 = vpop.f32.mrb[0].mxu0
      %v1022 = vpop.f32.mrb[0].mxu0
      %v1023 = vadd.f32 %v911, %v1022
      %v1024 = vpop.f32.mrb[0].mxu0
      %1025 = vmatprep.mubr.bf16.mxu0 0
      %1026 = vmatmul.mubr.bf16.gmra.mrb[0].mxu0 %v887
      %v1027 = vpop.f32.mrb[0].mxu0
      %v1028 = vadd.f32 %v911, %v1027
      %v1029 = vpop.f32.mrb[0].mxu0
      %v1030 = vpop.f32.mrb[0].mxu0
      %v1031 = vadd.f32 %v911, %v1030
      %v1032 = vpop.f32.mrb[0].mxu0
      %1033 = vmatprep.mubr.bf16.mxu0 0
      %1034 = vmatmul.mubr.bf16.gmra.mrb[0].mxu0 %v888
      %v1035 = vpop.f32.mrb[0].mxu0
      %v1036 = vadd.f32 %v911, %v1035
      %v1037 = vpop.f32.mrb[0].mxu0
      %v1038 = vpop.f32.mrb[0].mxu0
      %v1039 = vadd.f32 %v911, %v1038
      %v1040 = vpop.f32.mrb[0].mxu0
      %1041 = vmatprep.mubr.bf16.mxu0 0
      %1042 = vmatmul.mubr.bf16.gmra.mrb[0].mxu0 %v889
      %v1043 = vpop.f32.mrb[0].mxu0
      %v1044 = vadd.f32 %v911, %v1043
      %v1045 = vpop.f32.mrb[0].mxu0
      %v1046 = vpop.f32.mrb[0].mxu0
      %v1047 = vadd.f32 %v911, %v1046
      %v1048 = vpop.f32.mrb[0].mxu0
      %1049 = vdwg.mxu0
      %v1050 = vmin.f32 %v996, 0.0
      %v1051 = vmin.f32 %v999, 0.0
      %v1052 = vmin.f32 %v1004, 0.0
      %v1053 = vmin.f32 %v1007, 0.0
      %v1054 = vmin.f32 %v1012, 0.0
      %v1055 = vmin.f32 %v1015, 0.0
      %v1056 = vmin.f32 %v1020, 0.0
      %v1057 = vmin.f32 %v1023, 0.0
      %v1058 = vmin.f32 %v1028, 0.0
      %v1059 = vmin.f32 %v1031, 0.0
      %v1060 = vmin.f32 %v1036, 0.0
      %v1061 = vmin.f32 %v1039, 0.0
      %v1062 = vmin.f32 %v1044, 0.0
      %v1063 = vmin.f32 %v1047, 0.0
      %v1064 = vmul.f32 %v1050, 1.442695
      %v1065 = vpow.pop %v1064
      %v1066 = vmul.f32 %v1051, 1.442695
      %v1067 = vpow.pop %v1066
      %v1068 = vmul.f32 %v1052, 1.442695
      %v1069 = vpow.pop %v1068
      %v1070 = vmul.f32 %v1053, 1.442695
      %v1071 = vpow.pop %v1070
      %v1072 = vmul.f32 %v1054, 1.442695
      %v1073 = vpow.pop %v1072
      %v1074 = vmul.f32 %v1055, 1.442695
      %v1075 = vpow.pop %v1074
      %v1076 = vmul.f32 %v1056, 1.442695
      %v1077 = vpow.pop %v1076
      %v1078 = vmul.f32 %v1057, 1.442695
      %v1079 = vpow.pop %v1078
      %v1080 = vmul.f32 %v1058, 1.442695
      %v1081 = vpow.pop %v1080
      %v1082 = vmul.f32 %v1059, 1.442695
      %v1083 = vpow.pop %v1082
      %v1084 = vmul.f32 %v1060, 1.442695
      %v1085 = vpow.pop %v1084
      %v1086 = vmul.f32 %v1061, 1.442695
      %v1087 = vpow.pop %v1086
      %v1088 = vmul.f32 %v1062, 1.442695
      %v1089 = vpow.pop %v1088
      %v1090 = vmul.f32 %v1063, 1.442695
      %v1091 = vpow.pop %v1090
      %v1092 = vsub.f32 %v1065, 1.0
      %v1093 = vsub.f32 %v1067, 1.0
      %v1094 = vsub.f32 %v1069, 1.0
      %v1095 = vsub.f32 %v1071, 1.0
      %v1096 = vsub.f32 %v1073, 1.0
      %v1097 = vsub.f32 %v1075, 1.0
      %v1098 = vsub.f32 %v1077, 1.0
      %v1099 = vsub.f32 %v1079, 1.0
      %v1100 = vsub.f32 %v1081, 1.0
      %v1101 = vsub.f32 %v1083, 1.0
      %v1102 = vsub.f32 %v1085, 1.0
      %v1103 = vsub.f32 %v1087, 1.0
      %v1104 = vsub.f32 %v1089, 1.0
      %v1105 = vsub.f32 %v1091, 1.0
      %v1106 = vmul.f32 %v1092, 1.6732632
      %v1107 = vmul.f32 %v1093, 1.6732632
      %v1108 = vmul.f32 %v1094, 1.6732632
      %v1109 = vmul.f32 %v1095, 1.6732632
      %v1110 = vmul.f32 %v1096, 1.6732632
      %v1111 = vmul.f32 %v1097, 1.6732632
      %v1112 = vmul.f32 %v1098, 1.6732632
      %v1113 = vmul.f32 %v1099, 1.6732632
      %v1114 = vmul.f32 %v1100, 1.6732632
      %v1115 = vmul.f32 %v1101, 1.6732632
      %v1116 = vmul.f32 %v1102, 1.6732632
      %v1117 = vmul.f32 %v1103, 1.6732632
      %v1118 = vmul.f32 %v1104, 1.6732632
      %v1119 = vmul.f32 %v1105, 1.6732632
      %vm1120 = vcmp.gt.f32.partialorder %v996, 0.0
      %vm1121 = vcmp.gt.f32.partialorder %v999, 0.0
      %vm1122 = vcmp.gt.f32.partialorder %v1004, 0.0
      %vm1123 = vcmp.gt.f32.partialorder %v1007, 0.0
      %vm1124 = vcmp.gt.f32.partialorder %v1012, 0.0
      %vm1125 = vcmp.gt.f32.partialorder %v1015, 0.0
      %vm1126 = vcmp.gt.f32.partialorder %v1020, 0.0
      %vm1127 = vcmp.gt.f32.partialorder %v1023, 0.0
      %vm1128 = vcmp.gt.f32.partialorder %v1028, 0.0
      %vm1129 = vcmp.gt.f32.partialorder %v1031, 0.0
      %vm1130 = vcmp.gt.f32.partialorder %v1036, 0.0
      %vm1131 = vcmp.gt.f32.partialorder %v1039, 0.0
      %vm1132 = vcmp.gt.f32.partialorder %v1044, 0.0
      %vm1133 = vcmp.gt.f32.partialorder %v1047, 0.0
      %v1134 = vsel %vm1120, %v996, %v1106
      %v1135 = vsel %vm1121, %v999, %v1107
      %v1136 = vsel %vm1122, %v1004, %v1108
      %v1137 = vsel %vm1123, %v1007, %v1109
      %v1138 = vsel %vm1124, %v1012, %v1110
      %v1139 = vsel %vm1125, %v1015, %v1111
      %v1140 = vsel %vm1126, %v1020, %v1112
      %v1141 = vsel %vm1127, %v1023, %v1113
      %v1142 = vsel %vm1128, %v1028, %v1114
      %v1143 = vsel %vm1129, %v1031, %v1115
      %v1144 = vsel %vm1130, %v1036, %v1116
      %v1145 = vsel %vm1131, %v1039, %v1117
      %v1146 = vsel %vm1132, %v1044, %v1118
      %v1147 = vsel %vm1133, %v1047, %v1119
      %v1148 = vmul.f32 %v1134, 1.050701
      %v1149 = vmul.f32 %v1135, 1.050701
      %v1150 = vmul.f32 %v1136, 1.050701
      %v1151 = vmul.f32 %v1137, 1.050701
      %v1152 = vmul.f32 %v1138, 1.050701
      %v1153 = vmul.f32 %v1139, 1.050701
      %v1154 = vmul.f32 %v1140, 1.050701
      %v1155 = vmul.f32 %v1141, 1.050701
      %v1156 = vmul.f32 %v1142, 1.050701
      %v1157 = vmul.f32 %v1143, 1.050701
      %v1158 = vmul.f32 %v1144, 1.050701
      %v1159 = vmul.f32 %v1145, 1.050701
      %v1160 = vmul.f32 %v1146, 1.050701
      %v1161 = vmul.f32 %v1147, 1.050701
      %v1162 = vpack.c.bf16 %v1149, %v1148
      %v1163 = vpack.c.bf16 %v1151, %v1150
      %v1164 = vpack.c.bf16 %v1153, %v1152
      %v1165 = vpack.c.bf16 %v1155, %v1154
      %v1166 = vpack.c.bf16 %v1157, %v1156
      %v1167 = vpack.c.bf16 %v1159, %v1158
      %v1168 = vpack.c.bf16 %v1161, %v1160
      %v1169 = vld [vmem:[%s7] sm:$0xf]
      %v1170 = vld [vmem:[%s7 + $0x4] sm:$0xf]
      %v1171 = vld [vmem:[%s7 + $0x8] sm:$0xf]
      %v1172 = vld [vmem:[%s7 + $0xc] sm:$0xf]
      %v1173 = vld [vmem:[%s7 + $0x10] sm:$0xf]
      %v1174 = vld [vmem:[%s7 + $0x14] sm:$0xf]
      %v1175 = vld [vmem:[%s7 + $0x18] sm:$0xf]
      %v1176 = vld [vmem:[%s7 + $0x1c] sm:$0xf]
      %v1177 = vld [vmem:[%s7 + $0x20] sm:$0xf]
      %v1178 = vld [vmem:[%s7 + $0x24] sm:$0xf]
      %v1179 = vld [vmem:[%s7 + $0x28] sm:$0xf]
      %v1180 = vld [vmem:[%s7 + $0x2c] sm:$0xf]
      %v1181 = vld [vmem:[%s7 + $0x30] sm:$0xf]
      %v1182 = vld [vmem:[%s7 + $0x34] sm:$0xf]
      %v1183 = vld [vmem:[%s7 + $0x38] sm:$0xf]
      %v1184 = vld [vmem:[%s7 + $0x3c] sm:$0xf]
      %v1185 = vld [vmem:[%s8] sm:$0x1]
      %v1187 = vlaneseq
      %v1188 = vshrl.u32 %v1187, 7
      %v1189 = vsub.s32 0, %v1188
      %v1190 = vrot.slane %v1185, %v1189
      %v1208 = vunpack.c.l.b16 %v1169
      %v1209 = vunpack.c.l.b16 %v1170
      %v1210 = vunpack.c.l.b16 %v1171
      %v1211 = vunpack.c.l.b16 %v1172
      %v1212 = vunpack.c.l.b16 %v1173
      %v1213 = vunpack.c.l.b16 %v1174
      %v1214 = vunpack.c.l.b16 %v1175
      %v1215 = vunpack.c.l.b16 %v1176
      %v1216 = vunpack.c.l.b16 %v1177
      %v1217 = vunpack.c.l.b16 %v1178
      %v1218 = vunpack.c.l.b16 %v1179
      %v1219 = vunpack.c.l.b16 %v1180
      %v1220 = vunpack.c.l.b16 %v1181
      %v1221 = vunpack.c.l.b16 %v1182
      %v1222 = vunpack.c.l.b16 %v1183
      %v1223 = vunpack.c.l.b16 %v1184
      %v1224 = vpack.c.b16 %v1209, %v1208
      %v1225 = vpack.c.b16 %v1211, %v1210
      %v1226 = vpack.c.b16 %v1213, %v1212
      %v1227 = vpack.c.b16 %v1215, %v1214
      %v1228 = vpack.c.b16 %v1217, %v1216
      %v1229 = vpack.c.b16 %v1219, %v1218
      %v1230 = vpack.c.b16 %v1221, %v1220
      %v1231 = vpack.c.b16 %v1223, %v1222
      %1240 = vmatprep.subr.bf16.mxu0 0
      %1241 = vmatpush1.bf16.msra.mxu0 %v1224
      %1242 = vmatprep.subr.bf16.mxu0 0
      %1243 = vmatpush1.bf16.msra.mxu0 %v1225
      %1244 = vmatprep.subr.bf16.mxu0 0
      %1245 = vmatpush1.bf16.msra.mxu0 %v1226
      %1246 = vmatprep.subr.bf16.mxu0 0
      %1247 = vmatpush1.bf16.msra.mxu0 %v1227
      %1248 = vmatprep.subr.bf16.mxu0 0
      %1249 = vmatpush1.bf16.msra.mxu0 %v1228
      %1250 = vmatprep.subr.bf16.mxu0 0
      %1251 = vmatpush1.bf16.msra.mxu0 %v1229
      %1252 = vmatprep.subr.bf16.mxu0 0
      %1253 = vmatpush1.bf16.msra.mxu0 %v1230
      %1254 = vmatprep.subr.bf16.mxu0 0
      %1255 = vmatpush1.bf16.msra.mxu0 %v1231
      %1256 = vmatprep.subr.bf16.mxu0 0
      %1257 = vmatpush1.bf16.msra.mxu0 0
      %1258 = vmatprep.subr.bf16.mxu0 0
      %1259 = vmatpush1.bf16.msra.mxu0 0
      %1260 = vmatprep.subr.bf16.mxu0 0
      %1261 = vmatpush1.bf16.msra.mxu0 0
      %1262 = vmatprep.subr.bf16.mxu0 0
      %1263 = vmatpush1.bf16.msra.mxu0 0
      %1264 = vmatprep.subr.bf16.mxu0 0
      %1265 = vmatpush1.bf16.msra.mxu0 0
      %1266 = vmatprep.subr.bf16.mxu0 0
      %1267 = vmatpush1.bf16.msra.mxu0 0
      %1268 = vmatprep.subr.bf16.mxu0 0
      %1269 = vmatpush1.bf16.msra.mxu0 0
      %1270 = vmatprep.subr.bf16.mxu0 0
      %1271 = vmatpush1.bf16.msra.mxu0 0
      %1272 = vmatprep.mubr.bf16.mxu0 0
      %1273 = vmatmul.mubr.bf16.gmra.mrb[0].mxu0 %v1162
      %v1274 = vpop.f32.mrb[0].mxu0
      %v1275 = vadd.f32 %v1190, %v1274
      %v1276 = vpop.f32.mrb[0].mxu0
      %v1277 = vpop.f32.mrb[0].mxu0
      %v1278 = vadd.f32 %v1190, %v1277
      %v1279 = vpop.f32.mrb[0].mxu0
      %1280 = vmatprep.mubr.bf16.mxu0 0
      %1281 = vmatmul.mubr.bf16.gmra.mrb[0].mxu0 %v1163
      %v1282 = vpop.f32.mrb[0].mxu0
      %v1283 = vadd.f32 %v1190, %v1282
      %v1284 = vpop.f32.mrb[0].mxu0
      %v1285 = vpop.f32.mrb[0].mxu0
      %v1286 = vadd.f32 %v1190, %v1285
      %v1287 = vpop.f32.mrb[0].mxu0
      %1288 = vmatprep.mubr.bf16.mxu0 0
      %1289 = vmatmul.mubr.bf16.gmra.mrb[0].mxu0 %v1164
      %v1290 = vpop.f32.mrb[0].mxu0
      %v1291 = vadd.f32 %v1190, %v1290
      %v1292 = vpop.f32.mrb[0].mxu0
      %v1293 = vpop.f32.mrb[0].mxu0
      %v1294 = vadd.f32 %v1190, %v1293
      %v1295 = vpop.f32.mrb[0].mxu0
      %1296 = vmatprep.mubr.bf16.mxu0 0
      %1297 = vmatmul.mubr.bf16.gmra.mrb[0].mxu0 %v1165
      %v1298 = vpop.f32.mrb[0].mxu0
      %v1299 = vadd.f32 %v1190, %v1298
      %v1300 = vpop.f32.mrb[0].mxu0
      %v1301 = vpop.f32.mrb[0].mxu0
      %v1302 = vadd.f32 %v1190, %v1301
      %v1303 = vpop.f32.mrb[0].mxu0
      %1304 = vmatprep.mubr.bf16.mxu0 0
      %1305 = vmatmul.mubr.bf16.gmra.mrb[0].mxu0 %v1166
      %v1306 = vpop.f32.mrb[0].mxu0
      %v1307 = vadd.f32 %v1190, %v1306
      %v1308 = vpop.f32.mrb[0].mxu0
      %v1309 = vpop.f32.mrb[0].mxu0
      %v1310 = vadd.f32 %v1190, %v1309
      %v1311 = vpop.f32.mrb[0].mxu0
      %1312 = vmatprep.mubr.bf16.mxu0 0
      %1313 = vmatmul.mubr.bf16.gmra.mrb[0].mxu0 %v1167
      %v1314 = vpop.f32.mrb[0].mxu0
      %v1315 = vadd.f32 %v1190, %v1314
      %v1316 = vpop.f32.mrb[0].mxu0
      %v1317 = vpop.f32.mrb[0].mxu0
      %v1318 = vadd.f32 %v1190, %v1317
      %v1319 = vpop.f32.mrb[0].mxu0
      %1320 = vmatprep.mubr.bf16.mxu0 0
      %1321 = vmatmul.mubr.bf16.gmra.mrb[0].mxu0 %v1168
      %v1322 = vpop.f32.mrb[0].mxu0
      %v1323 = vadd.f32 %v1190, %v1322
      %v1324 = vpop.f32.mrb[0].mxu0
      %v1325 = vpop.f32.mrb[0].mxu0
      %v1326 = vadd.f32 %v1190, %v1325
      %v1327 = vpop.f32.mrb[0].mxu0
      %1328 = vdwg.mxu0
      %1329 = vst [vmem:[%s334] sm:$0xff] %v1275
      %1330 = vst [vmem:[%s334 + $0x8] sm:$0xff] %v1278
      %1331 = vst [vmem:[%s334 + $0x10] sm:$0xff] %v1283
      %1332 = vst [vmem:[%s334 + $0x18] sm:$0xff] %v1286
      %1333 = vst [vmem:[%s334 + $0x20] sm:$0xff] %v1291
      %1334 = vst [vmem:[%s334 + $0x28] sm:$0xff] %v1294
      %1335 = vst [vmem:[%s334 + $0x30] sm:$0xff] %v1299
      %1336 = vst [vmem:[%s334 + $0x38] sm:$0xff] %v1302
      %1337 = vst [vmem:[%s334 + $0x40] sm:$0xff] %v1307
      %1338 = vst [vmem:[%s334 + $0x48] sm:$0xff] %v1310
      %1339 = vst [vmem:[%s334 + $0x50] sm:$0xff] %v1315
      %1340 = vst [vmem:[%s334 + $0x58] sm:$0xff] %v1318
      %1341 = vst [vmem:[%s334 + $0x60] sm:$0xff] %v1323
      %1342 = vst [vmem:[%s334 + $0x68] sm:$0xff] %v1326
      %s1343 = smul.u32 14, %s20
      %p1344 = scmp.lt.s32.totalorder %s1343, 27
      %s1345 = scalar_select %p1344, %s1343, 27
      %s1346 = smul.addr %s1345, 8
      %s1347 = scalar_lea.vmem %s9, %s1346
      // Predicated region
      $region57: #{_lambda_.1} parent=55 // pred_check
        %p1348 = pneg %p232
      $region58: #{_lambda_.1} parent=55 // pred_check_branch
        %1350 = sbr.rel (%p1348) target = $region60
      $region59: #{_lambda_.1} parent=55 // pred_region
        %s1351 = smul.u32 14, %s20
      $region60: #{_lambda_.1} parent=55 // pred_fallthru
        _
    $region56: #{_lambda_.1} parent=5 // pred_fallthru
      _
    %p1352 = scmp.le.s32.totalorder 2, %s15
    // Predicated region
    $region61: #{_lambda_.1} parent=5 // pred_check
      %p1353 = pneg %p1352
    $region62: #{_lambda_.1} parent=5 // pred_check_branch
      %1355 = sbr.rel (%p1353) target = $region64
    $region63: #{_lambda_.1} parent=5 // pred_region
      %s1356 = ssub.s32 %s15, 2
      // Predicated region
      $region65: #{_lambda_.1} parent=63 // pred_check
        %p1357 = pneg %p238
      $region66: #{_lambda_.1} parent=63 // pred_check_branch
        %1359 = sbr.rel (%p1357) target = $region68
      $region67: #{_lambda_.1} parent=63 // pred_region
        %s1360 = smul.u32 14, %s21
        %p1361 = scmp.lt.s32.totalorder %s1360, 27
        %s1362 = scalar_select %p1361, %s1360, 27
        %s1363 = smul.addr %s1362, 8
        %s1364 = scalar_lea.vmem %s9, %s1363
      $region68: #{_lambda_.1} parent=63 // pred_fallthru
        _
    $region64: #{_lambda_.1} parent=5 // pred_fallthru
      _
  $region6: #{_lambda_.1} parent=0 // loop_footer
    %s19 = sadd.s32 1, %s15
  $region7: #{_lambda_.1} parent=0 // loop_footer_branch
    %14 = sbr.rel target = $region3
  $region8: #{_lambda_.1} parent=0 // loop_exit
    _

</llo_original>
